<compile_context>
chip_gen: v7x
topology: tpu7x:2x2x1
jax: 0.10.0
libtpu: 0.0.40
codegen_flags: <defaults>
</compile_context>

<pallas_src>
import functools
import math

import jax
import jax.numpy as jnp
from jax.experimental import pallas as pl
from jax.experimental.pallas import tpu as pltpu

BN_EPS = 1e-5


# ---------------------------------------------------------------------------
# Fused kernel: (kt,1) temporal conv (as one im2col matmul, K = kt*Cin)
#               + folded BatchNorm affine.
# Grid = (N, num_time_blocks); both axes are independent ("parallel").
# ---------------------------------------------------------------------------
def _tcn_conv_bn_kernel(xp_ref, w_ref, scale_ref, bias_ref, o_ref, *, kt, v, tb):
    # xp_ref   : ((t + kt - 1) * v, cin)  bf16   -- whole padded seq, resident per n
    # w_ref    : (kt * cin, cout)         bf16
    # scale_ref: (1, cout)                f32
    # bias_ref : (1, cout)                f32
    # o_ref    : (tb * v, cout)           f32
    rows = tb * v
    tbk = pl.program_id(1)
    r0 = pl.multiple_of(tbk * rows, rows)

    # im2col over the kt temporal taps: each tap is a plain row slice of the
    # flattened (time*V, Cin) input -- no reshape / relayout per tap.
    taps = [xp_ref[pl.ds(r0 + dt * v, rows), :] for dt in range(kt)]
    xcat = jnp.concatenate(taps, axis=-1)                    # (rows, kt*cin)

    y = jnp.dot(xcat, w_ref[...], preferred_element_type=jnp.float32)
    o_ref[...] = y * scale_ref[...] + bias_ref[...]


def _pick_t_block(t, v, target):
    """Largest divisor of t that is <= target and keeps (tb*v) % 8 == 0."""
    for d in range(min(t, target), 0, -1):
        if t % d == 0 and (d * v) % 8 == 0:
            return d
    return t  # tb == t  ->  block equals full dim, always layout-legal


def _tcn_conv_bn(xp2d, w_mat, scale, bias, *, n, t, v, cout, kt, tb):
    tp_rows = xp2d.shape[1]                                   # (t + kt - 1) * v
    ntb = t // tb
    kernel = functools.partial(_tcn_conv_bn_kernel, kt=kt, v=v, tb=tb)
    out = pl.pallas_call(
        kernel,
        out_shape=jax.ShapeDtypeStruct((n, t * v, cout), jnp.float32),
        grid_spec=pltpu.PrefetchScalarGridSpec(
            num_scalar_prefetch=0,
            grid=(n, ntb),
            in_specs=[
                # same block index along the row axis for every time block ->
                # the padded input is DMA'd once per batch element.
                pl.BlockSpec((None, tp_rows, xp2d.shape[2]),
                             lambda b, tbk: (b, 0, 0)),
                pl.BlockSpec((kt * xp2d.shape[2], cout), lambda b, tbk: (0, 0)),
                pl.BlockSpec((1, cout), lambda b, tbk: (0, 0)),
                pl.BlockSpec((1, cout), lambda b, tbk: (0, 0)),
            ],
            out_specs=pl.BlockSpec((None, tb * v, cout),
                                   lambda b, tbk: (b, tbk, 0)),
        ),
        compiler_params=pltpu.CompilerParams(
            dimension_semantics=("parallel", "parallel"),
            vmem_limit_bytes=48 * 1024 * 1024,
        ),
    )(xp2d, w_mat, scale, bias)
    return out


# ---------------------------------------------------------------------------
# Parameters (matching the module's __init__: kaiming_normal fan_out conv,
# bias = 0, BatchNorm weight = 1 / bias = 0, running stats 0 / 1).
# ---------------------------------------------------------------------------
def init_params(key, c_in, c_out, kt=9):
    kw, = jax.random.split(key, 1)
    std = math.sqrt(2.0 / (c_out * kt * 1))                   # fan_out = cout*kh*kw
    return dict(
        conv_w=jax.random.normal(kw, (c_out, c_in, kt, 1), jnp.float32) * std,
        conv_b=jnp.zeros((c_out,), jnp.float32),
        bn_gamma=jnp.ones((c_out,), jnp.float32),
        bn_beta=jnp.zeros((c_out,), jnp.float32),
        bn_mean=jnp.zeros((c_out,), jnp.float32),
        bn_var=jnp.ones((c_out,), jnp.float32),
    )


# ---------------------------------------------------------------------------
# unit_tcn forward.
# ---------------------------------------------------------------------------
def unit_tcn_forward(x, params, keep_prob=1.0, A=None, stride=1, t_block=64):
    """x: (N, C_in, T, V) float32 NCHW. Returns (N, C_out, T, V) float32."""
    if keep_prob != 1.0:
        raise NotImplementedError(
            "TODO(synk): DropBlock_Ske/DropBlockT_1d only implemented as "
            "identity (keep_prob == 1.0).")
    if stride != 1:
        raise NotImplementedError("TODO(synk): only stride == 1 implemented.")
    del A  # only consumed by DropBlock_Ske, which is identity here.

    n, c_in, t, v = x.shape
    w = params['conv_w']                                       # (cout, cin, kt, 1)
    c_out, _, kt, _ = w.shape
    pad = (kt - 1) // 2

    # Fold eval-mode BatchNorm (+ conv bias) into a per-channel affine.
    s = params['bn_gamma'] / jnp.sqrt(params['bn_var'] + BN_EPS)
    bias_eff = (params['conv_b'] - params['bn_mean']) * s + params['bn_beta']

    # Channels-last, pad the time axis, flatten (time, V) into rows so a
    # temporal shift of dt is a row offset of dt*V inside the kernel.
    x_cl = jnp.transpose(x, (0, 2, 3, 1)).astype(jnp.bfloat16)     # (n, t, v, cin)
    x_pad = jnp.pad(x_cl, ((0, 0), (pad, pad), (0, 0), (0, 0)))    # (n, t+kt-1, v, cin)
    xp2d = x_pad.reshape(n, (t + kt - 1) * v, c_in)                # contiguous reshape

    # (cout, cin, kt, 1) -> (kt, cin, cout) -> (kt*cin, cout), bf16 operand.
    w_mat = jnp.transpose(w[..., 0], (2, 1, 0)).reshape(kt * c_in, c_out)
    w_mat = w_mat.astype(jnp.bfloat16)

    tb = _pick_t_block(t, v, t_block)
    out2d = _tcn_conv_bn(
        xp2d, w_mat,
        s.reshape(1, c_out).astype(jnp.float32),
        bias_eff.reshape(1, c_out).astype(jnp.float32),
        n=n, t=t, v=v, cout=c_out, kt=kt, tb=tb)

    out_cl = out2d.reshape(n, t, v, c_out)
    return jnp.transpose(out_cl, (0, 3, 1, 2))                     # back to NCHW


# ---------------------------------------------------------------------------
# Pure-JAX reference (same math, same bf16-rounded operands, no Pallas).
# ---------------------------------------------------------------------------
def reference_forward(x, params, keep_prob=1.0):
    assert keep_prob == 1.0
    w = params['conv_w'][:, :, :, 0]                               # (cout, cin, kt)
    n, c_in, t, v = x.shape
    c_out, _, kt = w.shape
    pad = (kt - 1) // 2

    xb = x.astype(jnp.bfloat16).astype(jnp.float32)
    wb = w.astype(jnp.bfloat16).astype(jnp.float32)
    xp = jnp.pad(xb, ((0, 0), (0, 0), (pad, pad), (0, 0)))
    acc = jnp.zeros((n, c_out, t, v), jnp.float32)
    for dt in range(kt):
        acc = acc + jnp.einsum('nctv,oc->notv', xp[:, :, dt:dt + t, :], wb[:, :, dt])
    y = acc + params['conv_b'][None, :, None, None]
    y = ((y - params['bn_mean'][None, :, None, None])
         / jnp.sqrt(params['bn_var'][None, :, None, None] + BN_EPS)
         * params['bn_gamma'][None, :, None, None]
         + params['bn_beta'][None, :, None, None])
    return y  # DropBlocks are identity at keep_prob == 1.0


if __name__ == "__main__":
    key = jax.random.PRNGKey(0)
    k_x, k_p, k_a = jax.random.split(key, 3)

    N, C_in, C_out, T, V = 2, 4, 8, 16, 16

    x = jax.random.normal(k_x, (N, C_in, T, V), jnp.float32)
    A = jax.random.uniform(k_a, (3, V, V), jnp.float32)   # only used by DropBlock (identity here)
    params = init_params(k_p, C_in, C_out)

    # t_block=8 so the small test exercises the time-blocked grid (grid = (2, 2)).
    fwd = jax.jit(lambda xx: unit_tcn_forward(xx, params, keep_prob=1.0, A=A, t_block=8))
    out = jax.block_until_ready(fwd(x))

    ref = reference_forward(x, params, keep_prob=1.0)
    err = float(jnp.max(jnp.abs(out - ref)))
    assert out.shape == (N, C_out, T, V), out.shape
    assert err < 1e-3, f"max abs err vs pure-JAX reference: {err}"
    print("KERNEL_OK")
</pallas_src>

<mosaic_0001>
module attributes {stable_mosaic.version = 11 : i64} {
  func.func @_tcn_conv_bn_kernel(%arg0: i32, %arg1: i32, %arg2: memref<1x384x4xbf16, #tpu.memory_space<vmem>>, %arg3: memref<36x8xbf16, #tpu.memory_space<vmem>>, %arg4: memref<1x8xf32, #tpu.memory_space<vmem>>, %arg5: memref<1x8xf32, #tpu.memory_space<vmem>>, %arg6: memref<1x128x8xf32, #tpu.memory_space<vmem>>) attributes {dimension_semantics = [#tpu.dimension_semantics<parallel>, #tpu.dimension_semantics<parallel>], iteration_bounds = array<i64: 2, 2>, scalar_prefetch = 0 : i64, scratch_operands = 0 : i64, tpu.core_type = #tpu.core_type<tc>, window_params = [{transform_indices = @transform_0, window_bounds = array<i64: 1, 384, 4>}, {pipeline_mode = #tpu.pipeline_mode<synchronous>, transform_indices = @transform_1, window_bounds = array<i64: 36, 8>}, {pipeline_mode = #tpu.pipeline_mode<synchronous>, transform_indices = @transform_2, window_bounds = array<i64: 1, 8>}, {pipeline_mode = #tpu.pipeline_mode<synchronous>, transform_indices = @transform_3, window_bounds = array<i64: 1, 8>}, {transform_indices = @transform_4, window_bounds = array<i64: 1, 128, 8>}]} {
    %c128_i32 = arith.constant 128 : i32
    %0 = arith.muli %arg1, %c128_i32 : i32
    %1 = tpu.assume_multiple %0, 128 : i32
    %c0_i32 = arith.constant 0 : i32
    %2 = arith.addi %1, %c0_i32 : i32
    %c0 = arith.constant 0 : index
    %3 = arith.index_cast %2 : i32 to index
    %c0_0 = arith.constant 0 : index
    %4 = vector.load %arg2[%c0, %3, %c0_0] : memref<1x384x4xbf16, #tpu.memory_space<vmem>>, vector<1x128x4xbf16>
    %5 = vector.shape_cast %4 : vector<1x128x4xbf16> to vector<128x4xbf16>
    %c16_i32 = arith.constant 16 : i32
    %6 = arith.addi %1, %c16_i32 : i32
    %c0_1 = arith.constant 0 : index
    %7 = arith.index_cast %6 : i32 to index
    %c0_2 = arith.constant 0 : index
    %8 = vector.load %arg2[%c0_1, %7, %c0_2] : memref<1x384x4xbf16, #tpu.memory_space<vmem>>, vector<1x128x4xbf16>
    %9 = vector.shape_cast %8 : vector<1x128x4xbf16> to vector<128x4xbf16>
    %c32_i32 = arith.constant 32 : i32
    %10 = arith.addi %1, %c32_i32 : i32
    %c0_3 = arith.constant 0 : index
    %11 = arith.index_cast %10 : i32 to index
    %c0_4 = arith.constant 0 : index
    %12 = vector.load %arg2[%c0_3, %11, %c0_4] : memref<1x384x4xbf16, #tpu.memory_space<vmem>>, vector<1x128x4xbf16>
    %13 = vector.shape_cast %12 : vector<1x128x4xbf16> to vector<128x4xbf16>
    %c48_i32 = arith.constant 48 : i32
    %14 = arith.addi %1, %c48_i32 : i32
    %c0_5 = arith.constant 0 : index
    %15 = arith.index_cast %14 : i32 to index
    %c0_6 = arith.constant 0 : index
    %16 = vector.load %arg2[%c0_5, %15, %c0_6] : memref<1x384x4xbf16, #tpu.memory_space<vmem>>, vector<1x128x4xbf16>
    %17 = vector.shape_cast %16 : vector<1x128x4xbf16> to vector<128x4xbf16>
    %c64_i32 = arith.constant 64 : i32
    %18 = arith.addi %1, %c64_i32 : i32
    %c0_7 = arith.constant 0 : index
    %19 = arith.index_cast %18 : i32 to index
    %c0_8 = arith.constant 0 : index
    %20 = vector.load %arg2[%c0_7, %19, %c0_8] : memref<1x384x4xbf16, #tpu.memory_space<vmem>>, vector<1x128x4xbf16>
    %21 = vector.shape_cast %20 : vector<1x128x4xbf16> to vector<128x4xbf16>
    %c80_i32 = arith.constant 80 : i32
    %22 = arith.addi %1, %c80_i32 : i32
    %c0_9 = arith.constant 0 : index
    %23 = arith.index_cast %22 : i32 to index
    %c0_10 = arith.constant 0 : index
    %24 = vector.load %arg2[%c0_9, %23, %c0_10] : memref<1x384x4xbf16, #tpu.memory_space<vmem>>, vector<1x128x4xbf16>
    %25 = vector.shape_cast %24 : vector<1x128x4xbf16> to vector<128x4xbf16>
    %c96_i32 = arith.constant 96 : i32
    %26 = arith.addi %1, %c96_i32 : i32
    %c0_11 = arith.constant 0 : index
    %27 = arith.index_cast %26 : i32 to index
    %c0_12 = arith.constant 0 : index
    %28 = vector.load %arg2[%c0_11, %27, %c0_12] : memref<1x384x4xbf16, #tpu.memory_space<vmem>>, vector<1x128x4xbf16>
    %29 = vector.shape_cast %28 : vector<1x128x4xbf16> to vector<128x4xbf16>
    %c112_i32 = arith.constant 112 : i32
    %30 = arith.addi %1, %c112_i32 : i32
    %c0_13 = arith.constant 0 : index
    %31 = arith.index_cast %30 : i32 to index
    %c0_14 = arith.constant 0 : index
    %32 = vector.load %arg2[%c0_13, %31, %c0_14] : memref<1x384x4xbf16, #tpu.memory_space<vmem>>, vector<1x128x4xbf16>
    %33 = vector.shape_cast %32 : vector<1x128x4xbf16> to vector<128x4xbf16>
    %c128_i32_15 = arith.constant 128 : i32
    %34 = arith.addi %1, %c128_i32_15 : i32
    %c0_16 = arith.constant 0 : index
    %35 = arith.index_cast %34 : i32 to index
    %c0_17 = arith.constant 0 : index
    %36 = vector.load %arg2[%c0_16, %35, %c0_17] : memref<1x384x4xbf16, #tpu.memory_space<vmem>>, vector<1x128x4xbf16>
    %37 = vector.shape_cast %36 : vector<1x128x4xbf16> to vector<128x4xbf16>
    %38 = tpu.concatenate %5, %9, %13, %17, %21, %25, %29, %33, %37 in 1 : vector<128x4xbf16>, vector<128x4xbf16>, vector<128x4xbf16>, vector<128x4xbf16>, vector<128x4xbf16>, vector<128x4xbf16>, vector<128x4xbf16>, vector<128x4xbf16>, vector<128x4xbf16> -> vector<128x36xbf16>
    %c0_18 = arith.constant 0 : index
    %c0_19 = arith.constant 0 : index
    %39 = vector.load %arg3[%c0_18, %c0_19] : memref<36x8xbf16, #tpu.memory_space<vmem>>, vector<36x8xbf16>
    %cst = arith.constant dense<0.000000e+00> : vector<128x8xf32>
    %40 = tpu.matmul %38, %39, %cst {dimension_numbers = #tpu.dot_dimension_numbers<[1], [0], [0], [1], [0, 0, 1, 1], [], []>} : vector<128x36xbf16>, vector<36x8xbf16>, vector<128x8xf32> -> vector<128x8xf32>
    %c0_20 = arith.constant 0 : index
    %c0_21 = arith.constant 0 : index
    %41 = vector.load %arg4[%c0_20, %c0_21] : memref<1x8xf32, #tpu.memory_space<vmem>>, vector<1x8xf32>
    %42 = vector.broadcast %41 : vector<1x8xf32> to vector<128x8xf32>
    %43 = arith.mulf %40, %42 : vector<128x8xf32>
    %c0_22 = arith.constant 0 : index
    %c0_23 = arith.constant 0 : index
    %44 = vector.load %arg5[%c0_22, %c0_23] : memref<1x8xf32, #tpu.memory_space<vmem>>, vector<1x8xf32>
    %45 = vector.broadcast %44 : vector<1x8xf32> to vector<128x8xf32>
    %46 = arith.addf %43, %45 : vector<128x8xf32>
    %c0_24 = arith.constant 0 : index
    %c0_25 = arith.constant 0 : index
    %c0_26 = arith.constant 0 : index
    %47 = vector.load %arg6[%c0_24, %c0_25, %c0_26] : memref<1x128x8xf32, #tpu.memory_space<vmem>>, vector<1x128x8xf32>
    %48 = vector.shape_cast %47 : vector<1x128x8xf32> to vector<128x8xf32>
    %49 = vector.shape_cast %46 : vector<128x8xf32> to vector<1x128x8xf32>
    tpu.vector_store %arg6[%c0_24, %c0_25, %c0_26], %49 {strides = array<i32>} : memref<1x128x8xf32, #tpu.memory_space<vmem>>, vector<1x128x8xf32>,
    return
  }
  func.func @transform_0(%arg0: i32, %arg1: i32) -> (i32, i32, i32) {
    %c0_i32 = arith.constant 0 : i32
    %c0_i32_0 = arith.constant 0 : i32
    %c0_i32_1 = arith.constant 0 : i32
    return %arg0, %c0_i32, %c0_i32_0 : i32, i32, i32
  }
  func.func @transform_1(%arg0: i32, %arg1: i32) -> (i32, i32) {
    %c0_i32 = arith.constant 0 : i32
    %c0_i32_0 = arith.constant 0 : i32
    %c0_i32_1 = arith.constant 0 : i32
    return %c0_i32, %c0_i32_0 : i32, i32
  }
  func.func @transform_2(%arg0: i32, %arg1: i32) -> (i32, i32) {
    %c0_i32 = arith.constant 0 : i32
    %c0_i32_0 = arith.constant 0 : i32
    %c0_i32_1 = arith.constant 0 : i32
    return %c0_i32, %c0_i32_0 : i32, i32
  }
  func.func @transform_3(%arg0: i32, %arg1: i32) -> (i32, i32) {
    %c0_i32 = arith.constant 0 : i32
    %c0_i32_0 = arith.constant 0 : i32
    %c0_i32_1 = arith.constant 0 : i32
    return %c0_i32, %c0_i32_0 : i32, i32
  }
  func.func @transform_4(%arg0: i32, %arg1: i32) -> (i32, i32, i32) {
    %c0_i32 = arith.constant 0 : i32
    %c0_i32_0 = arith.constant 0 : i32
    return %arg0, %arg1, %c0_i32 : i32, i32, i32
  }
}

</mosaic_0001>

<llo_original>
// kernel: _lambda_.1
$region0: #{_lambda_.1}
  #allocation0 [shape = 'u32[]', space=smem, size = 0x4, offset = 0x4, fixed_abs, tag = 'smem constant byte address 0x4 - core index']
  #allocation1 [shape = 'u32[144,128]{1,0:T(1,128)}', space=vmem, size = 0x12000, scoped, tag = 'internal scratch']
  %s0 = inlined_call_operand.vmem [shape: bf16[2,384,4], index: 0, kind: input, shape index: {}]
  %s1 = inlined_call_operand.vmem [shape: bf16[36,8], index: 1, kind: input, shape index: {}]
  %s2 = inlined_call_operand.vmem [shape: f32[1,8], index: 2, kind: input, shape index: {}]
  %s3 = inlined_call_operand.vmem [shape: f32[1,8], index: 3, kind: input, shape index: {}]
  %s4 = inlined_call_operand.vmem [shape: f32[2,256,8], index: 4, kind: output, shape index: {}]
  %s5 = sld [smem:[#allocation0]]
  $region49: #{_lambda_.1} parent=0
    _
  %s7 = ssub.s32 1, %s5
  %s8 = scalar_select 0, %s7, %s5
  loop: start=0, step=1, limit=6
  $region2: #{_lambda_.1} parent=0 // loop_pre_header
    _
  $region3: #{_lambda_.1} parent=0 // loop_header
    %s10 = sphi 0, %s14
    %p11 = scmp.ge.s32.totalorder %s10, 6
    %s17 = sphi 0, %s29
    %s18 = sphi 0, %s25
    %s19 = sphi 0, %s17
    %s20 = sphi 0, %s18
    %s21 = sphi 0, %s19
    %s22 = sphi 0, %s20
    %s32 = sphi 0, %s34
    %s35 = sphi 0, %s32
    %s36 = sphi 0, %s35
    %s52 = sphi 0, %s36
    %s56 = sphi 0, %s56
    %s58 = sphi 0, %s56
    %s59 = sphi 0, %s58
    %s73 = sphi 0, %s59
    %s77 = sphi 0, %s77
    %s79 = sphi 0, %s77
    %s80 = sphi 0, %s79
    %s94 = sphi 0, %s80
    %s98 = sphi 0, %s98
    %s100 = sphi 0, %s98
    %s101 = sphi 0, %s100
    %s115 = sphi 0, %s101
    %s123 = sphi 0, %s125
    %s126 = sphi 0, %s123
    %s127 = sphi 0, %s126
    %s143 = sphi 0, %s127
  $region4: #{_lambda_.1} parent=0 // loop_header_branch
    %13 = sbr.rel (%p11) target = $region8
  $region5: #{_lambda_.1} parent=0 // loop_body
    %s15 = ssub.s32 %s10, 1
    %s16 = ssub.s32 %s10, 2
    %s23 = sadd.s32 1, %s18
    %p24 = scmp.ge.s32.totalorder %s23, 2
    %s25 = scalar_select %p24, 0, %s23
    %s26 = sadd.s32 1, %s17
    %s27 = scalar_select %p24, %s26, %s17
    %p28 = scmp.ge.s32.totalorder %s27, 2
    %s29 = scalar_select %p28, 0, %s27
    %s30 = ssub.s32 %s17, %s29
    %p31 = scmp.eq.s32.totalorder %s30, 0
    %s33 = sadd.s32 %s32, 1
    %s34 = scalar_select %p31, %s32, %s33
    %p37 = pneg %p31
    %p38 = scmp.eq.s32.totalorder %s10, 3
    %p39 = por %p37, %p38
    %p40 = scmp.ne.s32.totalorder %s32, %s35
    %p41 = scmp.eq.s32.totalorder %s10, 0
    %p42 = por %p40, %p41
    %p43 = scmp.ne.s32.totalorder %s32, %s35
    %p44 = scmp.eq.s32.totalorder %s15, 3
    %p45 = por %p43, %p44
    %p46 = scmp.ne.s32.totalorder %s35, %s36
    %p47 = scmp.eq.s32.totalorder %s15, 0
    %p48 = por %p46, %p47
    %p49 = scmp.ne.s32.totalorder %s35, %s36
    %p50 = scmp.eq.s32.totalorder %s16, 3
    %p51 = por %p49, %p50
    %p53 = scmp.ne.s32.totalorder %s36, %s52
    %p54 = scmp.eq.s32.totalorder %s16, 0
    %p55 = por %p53, %p54
    %s57 = sadd.s32 %s56, 1
    %p60 = scmp.eq.s32.totalorder %s10, 3
    %p61 = scmp.ne.s32.totalorder %s56, %s58
    %p62 = scmp.eq.s32.totalorder %s10, 0
    %p63 = por %p61, %p62
    %p64 = scmp.ne.s32.totalorder %s56, %s58
    %p65 = scmp.eq.s32.totalorder %s15, 3
    %p66 = por %p64, %p65
    %p67 = scmp.ne.s32.totalorder %s58, %s59
    %p68 = scmp.eq.s32.totalorder %s15, 0
    %p69 = por %p67, %p68
    %p70 = scmp.ne.s32.totalorder %s58, %s59
    %p71 = scmp.eq.s32.totalorder %s16, 3
    %p72 = por %p70, %p71
    %p74 = scmp.ne.s32.totalorder %s59, %s73
    %p75 = scmp.eq.s32.totalorder %s16, 0
    %p76 = por %p74, %p75
    %s78 = sadd.s32 %s77, 1
    %p81 = scmp.eq.s32.totalorder %s10, 3
    %p82 = scmp.ne.s32.totalorder %s77, %s79
    %p83 = scmp.eq.s32.totalorder %s10, 0
    %p84 = por %p82, %p83
    %p85 = scmp.ne.s32.totalorder %s77, %s79
    %p86 = scmp.eq.s32.totalorder %s15, 3
    %p87 = por %p85, %p86
    %p88 = scmp.ne.s32.totalorder %s79, %s80
    %p89 = scmp.eq.s32.totalorder %s15, 0
    %p90 = por %p88, %p89
    %p91 = scmp.ne.s32.totalorder %s79, %s80
    %p92 = scmp.eq.s32.totalorder %s16, 3
    %p93 = por %p91, %p92
    %p95 = scmp.ne.s32.totalorder %s80, %s94
    %p96 = scmp.eq.s32.totalorder %s16, 0
    %p97 = por %p95, %p96
    %s99 = sadd.s32 %s98, 1
    %p102 = scmp.eq.s32.totalorder %s10, 3
    %p103 = scmp.ne.s32.totalorder %s98, %s100
    %p104 = scmp.eq.s32.totalorder %s10, 0
    %p105 = por %p103, %p104
    %p106 = scmp.ne.s32.totalorder %s98, %s100
    %p107 = scmp.eq.s32.totalorder %s15, 3
    %p108 = por %p106, %p107
    %p109 = scmp.ne.s32.totalorder %s100, %s101
    %p110 = scmp.eq.s32.totalorder %s15, 0
    %p111 = por %p109, %p110
    %p112 = scmp.ne.s32.totalorder %s100, %s101
    %p113 = scmp.eq.s32.totalorder %s16, 3
    %p114 = por %p112, %p113
    %p116 = scmp.ne.s32.totalorder %s101, %s115
    %p117 = scmp.eq.s32.totalorder %s16, 0
    %p118 = por %p116, %p117
    %s119 = ssub.s32 %s17, %s29
    %s120 = ssub.s32 %s18, %s25
    %s121 = sor.u32 %s119, %s120
    %p122 = scmp.eq.s32.totalorder %s121, 0
    %s124 = sadd.s32 %s123, 1
    %s125 = scalar_select %p122, %s123, %s124
    %p128 = pneg %p122
    %p129 = scmp.eq.s32.totalorder %s10, 3
    %p130 = por %p128, %p129
    %p131 = scmp.ne.s32.totalorder %s123, %s126
    %p132 = scmp.eq.s32.totalorder %s10, 0
    %p133 = por %p131, %p132
    %p134 = scmp.ne.s32.totalorder %s123, %s126
    %p135 = scmp.eq.s32.totalorder %s15, 3
    %p136 = por %p134, %p135
    %p137 = scmp.ne.s32.totalorder %s126, %s127
    %p138 = scmp.eq.s32.totalorder %s15, 0
    %p139 = por %p137, %p138
    %p140 = scmp.ne.s32.totalorder %s126, %s127
    %p141 = scmp.eq.s32.totalorder %s16, 3
    %p142 = por %p140, %p141
    %p144 = scmp.ne.s32.totalorder %s127, %s143
    %p145 = scmp.eq.s32.totalorder %s16, 0
    %p146 = por %p144, %p145
    %p147 = scmp.le.s32.totalorder 1, %s10
    %p148 = scmp.lt.s32.totalorder %s10, 5
    %p149 = pnand %p147, %p148
    %p150 = pneg %p149
    // Predicated region
    $region9: #{_lambda_.1} parent=5 // pred_check
      _
    $region10: #{_lambda_.1} parent=5 // pred_check_branch
      %152 = sbr.rel (%p149) target = $region12
    $region11: #{_lambda_.1} parent=5 // pred_region
      %s153 = ssub.s32 %s10, 1
      // Predicated region
      $region13: #{_lambda_.1} parent=11 // pred_check
        %p154 = pneg %p69
      $region14: #{_lambda_.1} parent=11 // pred_check_branch
        %156 = sbr.rel (%p154) target = $region16
      $region15: #{_lambda_.1} parent=11 // pred_region
        _
      $region16: #{_lambda_.1} parent=11 // pred_fallthru
        _
      // Predicated region
      $region17: #{_lambda_.1} parent=11 // pred_check
        %p157 = pneg %p90
      $region18: #{_lambda_.1} parent=11 // pred_check_branch
        %159 = sbr.rel (%p157) target = $region20
      $region19: #{_lambda_.1} parent=11 // pred_region
        _
      $region20: #{_lambda_.1} parent=11 // pred_fallthru
        _
      // Predicated region
      $region21: #{_lambda_.1} parent=11 // pred_check
        %p160 = pneg %p111
      $region22: #{_lambda_.1} parent=11 // pred_check_branch
        %162 = sbr.rel (%p160) target = $region24
      $region23: #{_lambda_.1} parent=11 // pred_region
        _
      $region24: #{_lambda_.1} parent=11 // pred_fallthru
        _
    $region12: #{_lambda_.1} parent=5 // pred_fallthru
      _
    %p163 = scmp.lt.s32.totalorder %s10, 4
    // Predicated region
    $region25: #{_lambda_.1} parent=5 // pred_check
      %p164 = pneg %p163
    $region26: #{_lambda_.1} parent=5 // pred_check_branch
      %166 = sbr.rel (%p164) target = $region28
    $region27: #{_lambda_.1} parent=5 // pred_region
      // Predicated region
      $region29: #{_lambda_.1} parent=27 // pred_check
        %p167 = pneg %p42
      $region30: #{_lambda_.1} parent=27 // pred_check_branch
        %169 = sbr.rel (%p167) target = $region32
      $region31: #{_lambda_.1} parent=27 // pred_region
        %p170 = scmp.lt.s32.totalorder %s17, 1
        %s171 = scalar_select %p170, %s17, 1
        %s172 = smul.addr %s171, 48
        %s173 = smul.addr %s172, 4
        %s174 = scalar_lea.vmem %s0, %s173
      $region32: #{_lambda_.1} parent=27 // pred_fallthru
        _
    $region28: #{_lambda_.1} parent=5 // pred_fallthru
      _
    %p175 = scmp.le.s32.totalorder 1, %s10
    %p176 = scmp.lt.s32.totalorder %s10, 5
    %p177 = pnand %p175, %p176
    %p178 = pneg %p177
    // Predicated region
    $region33: #{_lambda_.1} parent=5 // pred_check
      _
    $region34: #{_lambda_.1} parent=5 // pred_check_branch
      %180 = sbr.rel (%p177) target = $region36
    $region35: #{_lambda_.1} parent=5 // pred_region
      %s181 = ssub.s32 %s10, 1
      %p182 = scmp.lt.s32.totalorder %s19, 1
      %s183 = scalar_select %p182, %s19, 1
      %s184 = smul.addr %s183, 48
      %s185 = smul.addr %s184, 4
      %s186 = scalar_lea.vmem %s0, %s185
      %p187 = pneg %p48
      %p188 = pneg %p45
      %p189 = pneg %p69
      %p190 = pneg %p66
      %p191 = pneg %p90
      %p192 = pneg %p87
      %p193 = pneg %p111
      %p194 = pneg %p108
      %p195 = pneg %p139
      %p196 = pneg %p136
      %s197 = smul.u32 16, %s20
      %p198 = scmp.lt.s32.totalorder %s19, 1
      %s199 = scalar_select %p198, %s19, 1
      %p200 = scmp.lt.s32.totalorder %s197, 31
      %s201 = scalar_select %p200, %s197, 31
      %s202 = smul.addr %s199, 32
      %s203 = sadd.s32 %s201, %s202
      %s204 = smul.addr %s203, 8
      %s205 = scalar_lea.vmem %s4, %s204
      %p206 = scmp.lt.s32.totalorder %s19, 1
      %s207 = scalar_select %p206, %s19, 1
      %s208 = smul.addr %s207, 48
      %s209 = smul.addr %s208, 4
      %s210 = scalar_lea.vmem %s0, %s209
      %s211 = smul.u32 16, %s20
      %p212 = scmp.lt.s32.totalorder %s19, 1
      %s213 = scalar_select %p212, %s19, 1
      %p214 = scmp.lt.s32.totalorder %s211, 31
      %s215 = scalar_select %p214, %s211, 31
      %s216 = smul.addr %s213, 32
      %s217 = sadd.s32 %s215, %s216
      %s218 = smul.addr %s217, 8
      %s219 = scalar_lea.vmem %s4, %s218
      %s220 = smul.u32 16, %s20
      %s222 = smul.u32 %s20, 128
      %s223 = sshra.s32 %s222, 3
      %s224 = sand.u32 %s222, 7
      %s225 = smul.addr %s223, 4
      %s226 = scalar_lea.vmem %s210, %s225
      %v227 = vld [vmem:[%s226] sm:$0xf]
      %v228 = vld [vmem:[%s226 + $0x4] sm:$0xf]
      %v229 = vld [vmem:[%s226 + $0x8] sm:$0xf]
      %v230 = vld [vmem:[%s226 + $0xc] sm:$0xf]
      %v231 = vld [vmem:[%s226 + $0x10] sm:$0xf]
      %v232 = vld [vmem:[%s226 + $0x14] sm:$0xf]
      %v233 = vld [vmem:[%s226 + $0x18] sm:$0xf]
      %v234 = vld [vmem:[%s226 + $0x1c] sm:$0xf]
      %v235 = vld [vmem:[%s226 + $0x20] sm:$0xf]
      %v236 = vld [vmem:[%s226 + $0x24] sm:$0xf]
      %v237 = vld [vmem:[%s226 + $0x28] sm:$0xf]
      %v238 = vld [vmem:[%s226 + $0x2c] sm:$0xf]
      %v239 = vld [vmem:[%s226 + $0x30] sm:$0xf]
      %v240 = vld [vmem:[%s226 + $0x34] sm:$0xf]
      %v241 = vld [vmem:[%s226 + $0x38] sm:$0xf]
      %v242 = vld [vmem:[%s226 + $0x3c] sm:$0xf]
      %s243 = sadd.s32 %s222, 16
      %s244 = sshra.s32 %s243, 3
      %s245 = sand.u32 %s243, 7
      %s246 = smul.addr %s244, 4
      %s247 = scalar_lea.vmem %s210, %s246
      %v248 = vld [vmem:[%s247] sm:$0xf]
      %v249 = vld [vmem:[%s247 + $0x4] sm:$0xf]
      %v250 = vld [vmem:[%s247 + $0x8] sm:$0xf]
      %v251 = vld [vmem:[%s247 + $0xc] sm:$0xf]
      %v252 = vld [vmem:[%s247 + $0x10] sm:$0xf]
      %v253 = vld [vmem:[%s247 + $0x14] sm:$0xf]
      %v254 = vld [vmem:[%s247 + $0x18] sm:$0xf]
      %v255 = vld [vmem:[%s247 + $0x1c] sm:$0xf]
      %v256 = vld [vmem:[%s247 + $0x20] sm:$0xf]
      %v257 = vld [vmem:[%s247 + $0x24] sm:$0xf]
      %v258 = vld [vmem:[%s247 + $0x28] sm:$0xf]
      %v259 = vld [vmem:[%s247 + $0x2c] sm:$0xf]
      %v260 = vld [vmem:[%s247 + $0x30] sm:$0xf]
      %v261 = vld [vmem:[%s247 + $0x34] sm:$0xf]
      %v262 = vld [vmem:[%s247 + $0x38] sm:$0xf]
      %v263 = vld [vmem:[%s247 + $0x3c] sm:$0xf]
      %s264 = sadd.s32 %s222, 32
      %s265 = sshra.s32 %s264, 3
      %s266 = sand.u32 %s264, 7
      %s267 = smul.addr %s265, 4
      %s268 = scalar_lea.vmem %s210, %s267
      %v269 = vld [vmem:[%s268] sm:$0xf]
      %v270 = vld [vmem:[%s268 + $0x4] sm:$0xf]
      %v271 = vld [vmem:[%s268 + $0x8] sm:$0xf]
      %v272 = vld [vmem:[%s268 + $0xc] sm:$0xf]
      %v273 = vld [vmem:[%s268 + $0x10] sm:$0xf]
      %v274 = vld [vmem:[%s268 + $0x14] sm:$0xf]
      %v275 = vld [vmem:[%s268 + $0x18] sm:$0xf]
      %v276 = vld [vmem:[%s268 + $0x1c] sm:$0xf]
      %v277 = vld [vmem:[%s268 + $0x20] sm:$0xf]
      %v278 = vld [vmem:[%s268 + $0x24] sm:$0xf]
      %v279 = vld [vmem:[%s268 + $0x28] sm:$0xf]
      %v280 = vld [vmem:[%s268 + $0x2c] sm:$0xf]
      %v281 = vld [vmem:[%s268 + $0x30] sm:$0xf]
      %v282 = vld [vmem:[%s268 + $0x34] sm:$0xf]
      %v283 = vld [vmem:[%s268 + $0x38] sm:$0xf]
      %v284 = vld [vmem:[%s268 + $0x3c] sm:$0xf]
      %s285 = sadd.s32 %s222, 48
      %s286 = sshra.s32 %s285, 3
      %s287 = sand.u32 %s285, 7
      %s288 = smul.addr %s286, 4
      %s289 = scalar_lea.vmem %s210, %s288
      %v290 = vld [vmem:[%s289] sm:$0xf]
      %v291 = vld [vmem:[%s289 + $0x4] sm:$0xf]
      %v292 = vld [vmem:[%s289 + $0x8] sm:$0xf]
      %v293 = vld [vmem:[%s289 + $0xc] sm:$0xf]
      %v294 = vld [vmem:[%s289 + $0x10] sm:$0xf]
      %v295 = vld [vmem:[%s289 + $0x14] sm:$0xf]
      %v296 = vld [vmem:[%s289 + $0x18] sm:$0xf]
      %v297 = vld [vmem:[%s289 + $0x1c] sm:$0xf]
      %v298 = vld [vmem:[%s289 + $0x20] sm:$0xf]
      %v299 = vld [vmem:[%s289 + $0x24] sm:$0xf]
      %v300 = vld [vmem:[%s289 + $0x28] sm:$0xf]
      %v301 = vld [vmem:[%s289 + $0x2c] sm:$0xf]
      %v302 = vld [vmem:[%s289 + $0x30] sm:$0xf]
      %v303 = vld [vmem:[%s289 + $0x34] sm:$0xf]
      %v304 = vld [vmem:[%s289 + $0x38] sm:$0xf]
      %v305 = vld [vmem:[%s289 + $0x3c] sm:$0xf]
      %s306 = sadd.s32 %s222, 64
      %s307 = sshra.s32 %s306, 3
      %s308 = sand.u32 %s306, 7
      %s309 = smul.addr %s307, 4
      %s310 = scalar_lea.vmem %s210, %s309
      %v311 = vld [vmem:[%s310] sm:$0xf]
      %v312 = vld [vmem:[%s310 + $0x4] sm:$0xf]
      %v313 = vld [vmem:[%s310 + $0x8] sm:$0xf]
      %v314 = vld [vmem:[%s310 + $0xc] sm:$0xf]
      %v315 = vld [vmem:[%s310 + $0x10] sm:$0xf]
      %v316 = vld [vmem:[%s310 + $0x14] sm:$0xf]
      %v317 = vld [vmem:[%s310 + $0x18] sm:$0xf]
      %v318 = vld [vmem:[%s310 + $0x1c] sm:$0xf]
      %v319 = vld [vmem:[%s310 + $0x20] sm:$0xf]
      %v320 = vld [vmem:[%s310 + $0x24] sm:$0xf]
      %v321 = vld [vmem:[%s310 + $0x28] sm:$0xf]
      %v322 = vld [vmem:[%s310 + $0x2c] sm:$0xf]
      %v323 = vld [vmem:[%s310 + $0x30] sm:$0xf]
      %v324 = vld [vmem:[%s310 + $0x34] sm:$0xf]
      %v325 = vld [vmem:[%s310 + $0x38] sm:$0xf]
      %v326 = vld [vmem:[%s310 + $0x3c] sm:$0xf]
      %s327 = sadd.s32 %s222, 80
      %s328 = sshra.s32 %s327, 3
      %s329 = sand.u32 %s327, 7
      %s330 = smul.addr %s328, 4
      %s331 = scalar_lea.vmem %s210, %s330
      %v332 = vld [vmem:[%s331] sm:$0xf]
      %v333 = vld [vmem:[%s331 + $0x4] sm:$0xf]
      %v334 = vld [vmem:[%s331 + $0x8] sm:$0xf]
      %v335 = vld [vmem:[%s331 + $0xc] sm:$0xf]
      %v336 = vld [vmem:[%s331 + $0x10] sm:$0xf]
      %v337 = vld [vmem:[%s331 + $0x14] sm:$0xf]
      %v338 = vld [vmem:[%s331 + $0x18] sm:$0xf]
      %v339 = vld [vmem:[%s331 + $0x1c] sm:$0xf]
      %v340 = vld [vmem:[%s331 + $0x20] sm:$0xf]
      %v341 = vld [vmem:[%s331 + $0x24] sm:$0xf]
      %v342 = vld [vmem:[%s331 + $0x28] sm:$0xf]
      %v343 = vld [vmem:[%s331 + $0x2c] sm:$0xf]
      %v344 = vld [vmem:[%s331 + $0x30] sm:$0xf]
      %v345 = vld [vmem:[%s331 + $0x34] sm:$0xf]
      %v346 = vld [vmem:[%s331 + $0x38] sm:$0xf]
      %v347 = vld [vmem:[%s331 + $0x3c] sm:$0xf]
      %s348 = sadd.s32 %s222, 96
      %s349 = sshra.s32 %s348, 3
      %s350 = sand.u32 %s348, 7
      %s351 = smul.addr %s349, 4
      %s352 = scalar_lea.vmem %s210, %s351
      %v353 = vld [vmem:[%s352] sm:$0xf]
      %v354 = vld [vmem:[%s352 + $0x4] sm:$0xf]
      %v355 = vld [vmem:[%s352 + $0x8] sm:$0xf]
      %v356 = vld [vmem:[%s352 + $0xc] sm:$0xf]
      %v357 = vld [vmem:[%s352 + $0x10] sm:$0xf]
      %v358 = vld [vmem:[%s352 + $0x14] sm:$0xf]
      %v359 = vld [vmem:[%s352 + $0x18] sm:$0xf]
      %v360 = vld [vmem:[%s352 + $0x1c] sm:$0xf]
      %v361 = vld [vmem:[%s352 + $0x20] sm:$0xf]
      %v362 = vld [vmem:[%s352 + $0x24] sm:$0xf]
      %v363 = vld [vmem:[%s352 + $0x28] sm:$0xf]
      %v364 = vld [vmem:[%s352 + $0x2c] sm:$0xf]
      %v365 = vld [vmem:[%s352 + $0x30] sm:$0xf]
      %v366 = vld [vmem:[%s352 + $0x34] sm:$0xf]
      %v367 = vld [vmem:[%s352 + $0x38] sm:$0xf]
      %v368 = vld [vmem:[%s352 + $0x3c] sm:$0xf]
      %s369 = sadd.s32 %s222, 112
      %s370 = sshra.s32 %s369, 3
      %s371 = sand.u32 %s369, 7
      %s372 = smul.addr %s370, 4
      %s373 = scalar_lea.vmem %s210, %s372
      %v374 = vld [vmem:[%s373] sm:$0xf]
      %v375 = vld [vmem:[%s373 + $0x4] sm:$0xf]
      %v376 = vld [vmem:[%s373 + $0x8] sm:$0xf]
      %v377 = vld [vmem:[%s373 + $0xc] sm:$0xf]
      %v378 = vld [vmem:[%s373 + $0x10] sm:$0xf]
      %v379 = vld [vmem:[%s373 + $0x14] sm:$0xf]
      %v380 = vld [vmem:[%s373 + $0x18] sm:$0xf]
      %v381 = vld [vmem:[%s373 + $0x1c] sm:$0xf]
      %v382 = vld [vmem:[%s373 + $0x20] sm:$0xf]
      %v383 = vld [vmem:[%s373 + $0x24] sm:$0xf]
      %v384 = vld [vmem:[%s373 + $0x28] sm:$0xf]
      %v385 = vld [vmem:[%s373 + $0x2c] sm:$0xf]
      %v386 = vld [vmem:[%s373 + $0x30] sm:$0xf]
      %v387 = vld [vmem:[%s373 + $0x34] sm:$0xf]
      %v388 = vld [vmem:[%s373 + $0x38] sm:$0xf]
      %v389 = vld [vmem:[%s373 + $0x3c] sm:$0xf]
      %s390 = sadd.s32 %s222, 128
      %s391 = sshra.s32 %s390, 3
      %s392 = sand.u32 %s390, 7
      %s393 = smul.addr %s391, 4
      %s394 = scalar_lea.vmem %s210, %s393
      %v395 = vld [vmem:[%s394] sm:$0xf]
      %v396 = vld [vmem:[%s394 + $0x4] sm:$0xf]
      %v397 = vld [vmem:[%s394 + $0x8] sm:$0xf]
      %v398 = vld [vmem:[%s394 + $0xc] sm:$0xf]
      %v399 = vld [vmem:[%s394 + $0x10] sm:$0xf]
      %v400 = vld [vmem:[%s394 + $0x14] sm:$0xf]
      %v401 = vld [vmem:[%s394 + $0x18] sm:$0xf]
      %v402 = vld [vmem:[%s394 + $0x1c] sm:$0xf]
      %v403 = vld [vmem:[%s394 + $0x20] sm:$0xf]
      %v404 = vld [vmem:[%s394 + $0x24] sm:$0xf]
      %v405 = vld [vmem:[%s394 + $0x28] sm:$0xf]
      %v406 = vld [vmem:[%s394 + $0x2c] sm:$0xf]
      %v407 = vld [vmem:[%s394 + $0x30] sm:$0xf]
      %v408 = vld [vmem:[%s394 + $0x34] sm:$0xf]
      %v409 = vld [vmem:[%s394 + $0x38] sm:$0xf]
      %v410 = vld [vmem:[%s394 + $0x3c] sm:$0xf]
      %v427 = vunpack.c.l.b16 %v227
      %v428 = vunpack.c.l.b16 %v228
      %v429 = vunpack.c.l.b16 %v229
      %v430 = vunpack.c.l.b16 %v230
      %v431 = vunpack.c.l.b16 %v231
      %v432 = vunpack.c.l.b16 %v232
      %v433 = vunpack.c.l.b16 %v233
      %v434 = vunpack.c.l.b16 %v234
      %v435 = vunpack.c.l.b16 %v235
      %v436 = vunpack.c.l.b16 %v236
      %v437 = vunpack.c.l.b16 %v237
      %v438 = vunpack.c.l.b16 %v238
      %v439 = vunpack.c.l.b16 %v239
      %v440 = vunpack.c.l.b16 %v240
      %v441 = vunpack.c.l.b16 %v241
      %v442 = vunpack.c.l.b16 %v242
      %v443 = vpack.c.b16 %v428, %v427
      %v444 = vpack.c.b16 %v430, %v429
      %v445 = vpack.c.b16 %v432, %v431
      %v446 = vpack.c.b16 %v434, %v433
      %v447 = vpack.c.b16 %v436, %v435
      %v448 = vpack.c.b16 %v438, %v437
      %v449 = vpack.c.b16 %v440, %v439
      %v450 = vpack.c.b16 %v442, %v441
      %v467 = vunpack.c.l.b16 %v248
      %v468 = vunpack.c.l.b16 %v249
      %v469 = vunpack.c.l.b16 %v250
      %v470 = vunpack.c.l.b16 %v251
      %v471 = vunpack.c.l.b16 %v252
      %v472 = vunpack.c.l.b16 %v253
      %v473 = vunpack.c.l.b16 %v254
      %v474 = vunpack.c.l.b16 %v255
      %v475 = vunpack.c.l.b16 %v256
      %v476 = vunpack.c.l.b16 %v257
      %v477 = vunpack.c.l.b16 %v258
      %v478 = vunpack.c.l.b16 %v259
      %v479 = vunpack.c.l.b16 %v260
      %v480 = vunpack.c.l.b16 %v261
      %v481 = vunpack.c.l.b16 %v262
      %v482 = vunpack.c.l.b16 %v263
      %v483 = vpack.c.b16 %v468, %v467
      %v484 = vpack.c.b16 %v470, %v469
      %v485 = vpack.c.b16 %v472, %v471
      %v486 = vpack.c.b16 %v474, %v473
      %v487 = vpack.c.b16 %v476, %v475
      %v488 = vpack.c.b16 %v478, %v477
      %v489 = vpack.c.b16 %v480, %v479
      %v490 = vpack.c.b16 %v482, %v481
      %491 = vrot.lane.b32.xlu0 %v483, 4
      %v492 = vpop.permute.xlu0 %491
      %493 = vrot.lane.b32.xlu0 %v484, 4
      %v494 = vpop.permute.xlu0 %493
      %495 = vrot.lane.b32.xlu0 %v485, 4
      %v496 = vpop.permute.xlu0 %495
      %497 = vrot.lane.b32.xlu0 %v486, 4
      %v498 = vpop.permute.xlu0 %497
      %499 = vrot.lane.b32.xlu0 %v487, 4
      %v500 = vpop.permute.xlu0 %499
      %501 = vrot.lane.b32.xlu0 %v488, 4
      %v502 = vpop.permute.xlu0 %501
      %503 = vrot.lane.b32.xlu0 %v489, 4
      %v504 = vpop.permute.xlu0 %503
      %505 = vrot.lane.b32.xlu0 %v490, 4
      %v506 = vpop.permute.xlu0 %505
      %v523 = vunpack.c.l.b16 %v269
      %v524 = vunpack.c.l.b16 %v270
      %v525 = vunpack.c.l.b16 %v271
      %v526 = vunpack.c.l.b16 %v272
      %v527 = vunpack.c.l.b16 %v273
      %v528 = vunpack.c.l.b16 %v274
      %v529 = vunpack.c.l.b16 %v275
      %v530 = vunpack.c.l.b16 %v276
      %v531 = vunpack.c.l.b16 %v277
      %v532 = vunpack.c.l.b16 %v278
      %v533 = vunpack.c.l.b16 %v279
      %v534 = vunpack.c.l.b16 %v280
      %v535 = vunpack.c.l.b16 %v281
      %v536 = vunpack.c.l.b16 %v282
      %v537 = vunpack.c.l.b16 %v283
      %v538 = vunpack.c.l.b16 %v284
      %v539 = vpack.c.b16 %v524, %v523
      %v540 = vpack.c.b16 %v526, %v525
      %v541 = vpack.c.b16 %v528, %v527
      %v542 = vpack.c.b16 %v530, %v529
      %v543 = vpack.c.b16 %v532, %v531
      %v544 = vpack.c.b16 %v534, %v533
      %v545 = vpack.c.b16 %v536, %v535
      %v546 = vpack.c.b16 %v538, %v537
      %547 = vrot.lane.b32.xlu0 %v539, 8
      %v548 = vpop.permute.xlu0 %547
      %549 = vrot.lane.b32.xlu0 %v540, 8
      %v550 = vpop.permute.xlu0 %549
      %551 = vrot.lane.b32.xlu0 %v541, 8
      %v552 = vpop.permute.xlu0 %551
      %553 = vrot.lane.b32.xlu0 %v542, 8
      %v554 = vpop.permute.xlu0 %553
      %555 = vrot.lane.b32.xlu0 %v543, 8
      %v556 = vpop.permute.xlu0 %555
      %557 = vrot.lane.b32.xlu0 %v544, 8
      %v558 = vpop.permute.xlu0 %557
      %559 = vrot.lane.b32.xlu0 %v545, 8
      %v560 = vpop.permute.xlu0 %559
      %561 = vrot.lane.b32.xlu0 %v546, 8
      %v562 = vpop.permute.xlu0 %561
      %v579 = vunpack.c.l.b16 %v290
      %v580 = vunpack.c.l.b16 %v291
      %v581 = vunpack.c.l.b16 %v292
      %v582 = vunpack.c.l.b16 %v293
      %v583 = vunpack.c.l.b16 %v294
      %v584 = vunpack.c.l.b16 %v295
      %v585 = vunpack.c.l.b16 %v296
      %v586 = vunpack.c.l.b16 %v297
      %v587 = vunpack.c.l.b16 %v298
      %v588 = vunpack.c.l.b16 %v299
      %v589 = vunpack.c.l.b16 %v300
      %v590 = vunpack.c.l.b16 %v301
      %v591 = vunpack.c.l.b16 %v302
      %v592 = vunpack.c.l.b16 %v303
      %v593 = vunpack.c.l.b16 %v304
      %v594 = vunpack.c.l.b16 %v305
      %v595 = vpack.c.b16 %v580, %v579
      %v596 = vpack.c.b16 %v582, %v581
      %v597 = vpack.c.b16 %v584, %v583
      %v598 = vpack.c.b16 %v586, %v585
      %v599 = vpack.c.b16 %v588, %v587
      %v600 = vpack.c.b16 %v590, %v589
      %v601 = vpack.c.b16 %v592, %v591
      %v602 = vpack.c.b16 %v594, %v593
      %603 = vrot.lane.b32.xlu0 %v595, 12
      %v604 = vpop.permute.xlu0 %603
      %605 = vrot.lane.b32.xlu0 %v596, 12
      %v606 = vpop.permute.xlu0 %605
      %607 = vrot.lane.b32.xlu0 %v597, 12
      %v608 = vpop.permute.xlu0 %607
      %609 = vrot.lane.b32.xlu0 %v598, 12
      %v610 = vpop.permute.xlu0 %609
      %611 = vrot.lane.b32.xlu0 %v599, 12
      %v612 = vpop.permute.xlu0 %611
      %613 = vrot.lane.b32.xlu0 %v600, 12
      %v614 = vpop.permute.xlu0 %613
      %615 = vrot.lane.b32.xlu0 %v601, 12
      %v616 = vpop.permute.xlu0 %615
      %617 = vrot.lane.b32.xlu0 %v602, 12
      %v618 = vpop.permute.xlu0 %617
      %v635 = vunpack.c.l.b16 %v311
      %v636 = vunpack.c.l.b16 %v312
      %v637 = vunpack.c.l.b16 %v313
      %v638 = vunpack.c.l.b16 %v314
      %v639 = vunpack.c.l.b16 %v315
      %v640 = vunpack.c.l.b16 %v316
      %v641 = vunpack.c.l.b16 %v317
      %v642 = vunpack.c.l.b16 %v318
      %v643 = vunpack.c.l.b16 %v319
      %v644 = vunpack.c.l.b16 %v320
      %v645 = vunpack.c.l.b16 %v321
      %v646 = vunpack.c.l.b16 %v322
      %v647 = vunpack.c.l.b16 %v323
      %v648 = vunpack.c.l.b16 %v324
      %v649 = vunpack.c.l.b16 %v325
      %v650 = vunpack.c.l.b16 %v326
      %v651 = vpack.c.b16 %v636, %v635
      %v652 = vpack.c.b16 %v638, %v637
      %v653 = vpack.c.b16 %v640, %v639
      %v654 = vpack.c.b16 %v642, %v641
      %v655 = vpack.c.b16 %v644, %v643
      %v656 = vpack.c.b16 %v646, %v645
      %v657 = vpack.c.b16 %v648, %v647
      %v658 = vpack.c.b16 %v650, %v649
      %659 = vrot.lane.b32.xlu0 %v651, 16
      %v660 = vpop.permute.xlu0 %659
      %661 = vrot.lane.b32.xlu0 %v652, 16
      %v662 = vpop.permute.xlu0 %661
      %663 = vrot.lane.b32.xlu0 %v653, 16
      %v664 = vpop.permute.xlu0 %663
      %665 = vrot.lane.b32.xlu0 %v654, 16
      %v666 = vpop.permute.xlu0 %665
      %667 = vrot.lane.b32.xlu0 %v655, 16
      %v668 = vpop.permute.xlu0 %667
      %669 = vrot.lane.b32.xlu0 %v656, 16
      %v670 = vpop.permute.xlu0 %669
      %671 = vrot.lane.b32.xlu0 %v657, 16
      %v672 = vpop.permute.xlu0 %671
      %673 = vrot.lane.b32.xlu0 %v658, 16
      %v674 = vpop.permute.xlu0 %673
      %v691 = vunpack.c.l.b16 %v332
      %v692 = vunpack.c.l.b16 %v333
      %v693 = vunpack.c.l.b16 %v334
      %v694 = vunpack.c.l.b16 %v335
      %v695 = vunpack.c.l.b16 %v336
      %v696 = vunpack.c.l.b16 %v337
      %v697 = vunpack.c.l.b16 %v338
      %v698 = vunpack.c.l.b16 %v339
      %v699 = vunpack.c.l.b16 %v340
      %v700 = vunpack.c.l.b16 %v341
      %v701 = vunpack.c.l.b16 %v342
      %v702 = vunpack.c.l.b16 %v343
      %v703 = vunpack.c.l.b16 %v344
      %v704 = vunpack.c.l.b16 %v345
      %v705 = vunpack.c.l.b16 %v346
      %v706 = vunpack.c.l.b16 %v347
      %v707 = vpack.c.b16 %v692, %v691
      %v708 = vpack.c.b16 %v694, %v693
      %v709 = vpack.c.b16 %v696, %v695
      %v710 = vpack.c.b16 %v698, %v697
      %v711 = vpack.c.b16 %v700, %v699
      %v712 = vpack.c.b16 %v702, %v701
      %v713 = vpack.c.b16 %v704, %v703
      %v714 = vpack.c.b16 %v706, %v705
      %715 = vrot.lane.b32.xlu0 %v707, 20
      %v716 = vpop.permute.xlu0 %715
      %717 = vrot.lane.b32.xlu0 %v708, 20
      %v718 = vpop.permute.xlu0 %717
      %719 = vrot.lane.b32.xlu0 %v709, 20
      %v720 = vpop.permute.xlu0 %719
      %721 = vrot.lane.b32.xlu0 %v710, 20
      %v722 = vpop.permute.xlu0 %721
      %723 = vrot.lane.b32.xlu0 %v711, 20
      %v724 = vpop.permute.xlu0 %723
      %725 = vrot.lane.b32.xlu0 %v712, 20
      %v726 = vpop.permute.xlu0 %725
      %727 = vrot.lane.b32.xlu0 %v713, 20
      %v728 = vpop.permute.xlu0 %727
      %729 = vrot.lane.b32.xlu0 %v714, 20
      %v730 = vpop.permute.xlu0 %729
      %v747 = vunpack.c.l.b16 %v353
      %v748 = vunpack.c.l.b16 %v354
      %v749 = vunpack.c.l.b16 %v355
      %v750 = vunpack.c.l.b16 %v356
      %v751 = vunpack.c.l.b16 %v357
      %v752 = vunpack.c.l.b16 %v358
      %v753 = vunpack.c.l.b16 %v359
      %v754 = vunpack.c.l.b16 %v360
      %v755 = vunpack.c.l.b16 %v361
      %v756 = vunpack.c.l.b16 %v362
      %v757 = vunpack.c.l.b16 %v363
      %v758 = vunpack.c.l.b16 %v364
      %v759 = vunpack.c.l.b16 %v365
      %v760 = vunpack.c.l.b16 %v366
      %v761 = vunpack.c.l.b16 %v367
      %v762 = vunpack.c.l.b16 %v368
      %v763 = vpack.c.b16 %v748, %v747
      %v764 = vpack.c.b16 %v750, %v749
      %v765 = vpack.c.b16 %v752, %v751
      %v766 = vpack.c.b16 %v754, %v753
      %v767 = vpack.c.b16 %v756, %v755
      %v768 = vpack.c.b16 %v758, %v757
      %v769 = vpack.c.b16 %v760, %v759
      %v770 = vpack.c.b16 %v762, %v761
      %771 = vrot.lane.b32.xlu0 %v763, 24
      %v772 = vpop.permute.xlu0 %771
      %773 = vrot.lane.b32.xlu0 %v764, 24
      %v774 = vpop.permute.xlu0 %773
      %775 = vrot.lane.b32.xlu0 %v765, 24
      %v776 = vpop.permute.xlu0 %775
      %777 = vrot.lane.b32.xlu0 %v766, 24
      %v778 = vpop.permute.xlu0 %777
      %779 = vrot.lane.b32.xlu0 %v767, 24
      %v780 = vpop.permute.xlu0 %779
      %781 = vrot.lane.b32.xlu0 %v768, 24
      %v782 = vpop.permute.xlu0 %781
      %783 = vrot.lane.b32.xlu0 %v769, 24
      %v784 = vpop.permute.xlu0 %783
      %785 = vrot.lane.b32.xlu0 %v770, 24
      %v786 = vpop.permute.xlu0 %785
      %v803 = vunpack.c.l.b16 %v374
      %v804 = vunpack.c.l.b16 %v375
      %v805 = vunpack.c.l.b16 %v376
      %v806 = vunpack.c.l.b16 %v377
      %v807 = vunpack.c.l.b16 %v378
      %v808 = vunpack.c.l.b16 %v379
      %v809 = vunpack.c.l.b16 %v380
      %v810 = vunpack.c.l.b16 %v381
      %v811 = vunpack.c.l.b16 %v382
      %v812 = vunpack.c.l.b16 %v383
      %v813 = vunpack.c.l.b16 %v384
      %v814 = vunpack.c.l.b16 %v385
      %v815 = vunpack.c.l.b16 %v386
      %v816 = vunpack.c.l.b16 %v387
      %v817 = vunpack.c.l.b16 %v388
      %v818 = vunpack.c.l.b16 %v389
      %v819 = vpack.c.b16 %v804, %v803
      %v820 = vpack.c.b16 %v806, %v805
      %v821 = vpack.c.b16 %v808, %v807
      %v822 = vpack.c.b16 %v810, %v809
      %v823 = vpack.c.b16 %v812, %v811
      %v824 = vpack.c.b16 %v814, %v813
      %v825 = vpack.c.b16 %v816, %v815
      %v826 = vpack.c.b16 %v818, %v817
      %827 = vrot.lane.b32.xlu0 %v819, 28
      %v828 = vpop.permute.xlu0 %827
      %829 = vrot.lane.b32.xlu0 %v820, 28
      %v830 = vpop.permute.xlu0 %829
      %831 = vrot.lane.b32.xlu0 %v821, 28
      %v832 = vpop.permute.xlu0 %831
      %833 = vrot.lane.b32.xlu0 %v822, 28
      %v834 = vpop.permute.xlu0 %833
      %835 = vrot.lane.b32.xlu0 %v823, 28
      %v836 = vpop.permute.xlu0 %835
      %837 = vrot.lane.b32.xlu0 %v824, 28
      %v838 = vpop.permute.xlu0 %837
      %839 = vrot.lane.b32.xlu0 %v825, 28
      %v840 = vpop.permute.xlu0 %839
      %841 = vrot.lane.b32.xlu0 %v826, 28
      %v842 = vpop.permute.xlu0 %841
      %v859 = vunpack.c.l.b16 %v395
      %v860 = vunpack.c.l.b16 %v396
      %v861 = vunpack.c.l.b16 %v397
      %v862 = vunpack.c.l.b16 %v398
      %v863 = vunpack.c.l.b16 %v399
      %v864 = vunpack.c.l.b16 %v400
      %v865 = vunpack.c.l.b16 %v401
      %v866 = vunpack.c.l.b16 %v402
      %v867 = vunpack.c.l.b16 %v403
      %v868 = vunpack.c.l.b16 %v404
      %v869 = vunpack.c.l.b16 %v405
      %v870 = vunpack.c.l.b16 %v406
      %v871 = vunpack.c.l.b16 %v407
      %v872 = vunpack.c.l.b16 %v408
      %v873 = vunpack.c.l.b16 %v409
      %v874 = vunpack.c.l.b16 %v410
      %v875 = vpack.c.b16 %v860, %v859
      %v876 = vpack.c.b16 %v862, %v861
      %v877 = vpack.c.b16 %v864, %v863
      %v878 = vpack.c.b16 %v866, %v865
      %v879 = vpack.c.b16 %v868, %v867
      %v880 = vpack.c.b16 %v870, %v869
      %v881 = vpack.c.b16 %v872, %v871
      %v882 = vpack.c.b16 %v874, %v873
      %883 = vrot.lane.b32.xlu0 %v875, 32
      %v884 = vpop.permute.xlu0 %883
      %885 = vrot.lane.b32.xlu0 %v876, 32
      %v886 = vpop.permute.xlu0 %885
      %887 = vrot.lane.b32.xlu0 %v877, 32
      %v888 = vpop.permute.xlu0 %887
      %889 = vrot.lane.b32.xlu0 %v878, 32
      %v890 = vpop.permute.xlu0 %889
      %891 = vrot.lane.b32.xlu0 %v879, 32
      %v892 = vpop.permute.xlu0 %891
      %893 = vrot.lane.b32.xlu0 %v880, 32
      %v894 = vpop.permute.xlu0 %893
      %895 = vrot.lane.b32.xlu0 %v881, 32
      %v896 = vpop.permute.xlu0 %895
      %897 = vrot.lane.b32.xlu0 %v882, 32
      %v898 = vpop.permute.xlu0 %897
      %vm899 = vcmask 31744
      %v902 = vsel %vm899, %v443, %v492
      %v905 = vsel %vm899, %v444, %v494
      %v908 = vsel %vm899, %v445, %v496
      %v911 = vsel %vm899, %v446, %v498
      %v914 = vsel %vm899, %v447, %v500
      %v917 = vsel %vm899, %v448, %v502
      %v920 = vsel %vm899, %v449, %v504
      %v923 = vsel %vm899, %v450, %v506
      %vm924 = vcmask 64512
      %v926 = vsel %vm924, %v902, %v548
      %v928 = vsel %vm924, %v905, %v550
      %v930 = vsel %vm924, %v908, %v552
      %v932 = vsel %vm924, %v911, %v554
      %v934 = vsel %vm924, %v914, %v556
      %v936 = vsel %vm924, %v917, %v558
      %v938 = vsel %vm924, %v920, %v560
      %v940 = vsel %vm924, %v923, %v562
      %vm941 = vcmask 97280
      %v943 = vsel %vm941, %v926, %v604
      %v945 = vsel %vm941, %v928, %v606
      %v947 = vsel %vm941, %v930, %v608
      %v949 = vsel %vm941, %v932, %v610
      %v951 = vsel %vm941, %v934, %v612
      %v953 = vsel %vm941, %v936, %v614
      %v955 = vsel %vm941, %v938, %v616
      %v957 = vsel %vm941, %v940, %v618
      %vm958 = vcmask 130048
      %v960 = vsel %vm958, %v943, %v660
      %v962 = vsel %vm958, %v945, %v662
      %v964 = vsel %vm958, %v947, %v664
      %v966 = vsel %vm958, %v949, %v666
      %v968 = vsel %vm958, %v951, %v668
      %v970 = vsel %vm958, %v953, %v670
      %v972 = vsel %vm958, %v955, %v672
      %v974 = vsel %vm958, %v957, %v674
      %vm975 = vcmask 162816
      %v977 = vsel %vm975, %v960, %v716
      %v979 = vsel %vm975, %v962, %v718
      %v981 = vsel %vm975, %v964, %v720
      %v983 = vsel %vm975, %v966, %v722
      %v985 = vsel %vm975, %v968, %v724
      %v987 = vsel %vm975, %v970, %v726
      %v989 = vsel %vm975, %v972, %v728
      %v991 = vsel %vm975, %v974, %v730
      %vm992 = vcmask 195584
      %v994 = vsel %vm992, %v977, %v772
      %v996 = vsel %vm992, %v979, %v774
      %v998 = vsel %vm992, %v981, %v776
      %v1000 = vsel %vm992, %v983, %v778
      %v1002 = vsel %vm992, %v985, %v780
      %v1004 = vsel %vm992, %v987, %v782
      %v1006 = vsel %vm992, %v989, %v784
      %v1008 = vsel %vm992, %v991, %v786
      %vm1009 = vcmask 228352
      %v1011 = vsel %vm1009, %v994, %v828
      %v1013 = vsel %vm1009, %v996, %v830
      %v1015 = vsel %vm1009, %v998, %v832
      %v1017 = vsel %vm1009, %v1000, %v834
      %v1019 = vsel %vm1009, %v1002, %v836
      %v1021 = vsel %vm1009, %v1004, %v838
      %v1023 = vsel %vm1009, %v1006, %v840
      %v1025 = vsel %vm1009, %v1008, %v842
      %vm1026 = vcmask 261120
      %v1028 = vsel %vm1026, %v1011, %v884
      %v1030 = vsel %vm1026, %v1013, %v886
      %v1032 = vsel %vm1026, %v1015, %v888
      %v1034 = vsel %vm1026, %v1017, %v890
      %v1036 = vsel %vm1026, %v1019, %v892
      %v1038 = vsel %vm1026, %v1021, %v894
      %v1040 = vsel %vm1026, %v1023, %v896
      %v1042 = vsel %vm1026, %v1025, %v898
      %v1043 = vld [vmem:[%s1] sm:$0xf]
      %v1044 = vld [vmem:[%s1 + $0x4] sm:$0xf]
      %v1045 = vld [vmem:[%s1 + $0x8] sm:$0xf]
      %v1046 = vld [vmem:[%s1 + $0xc] sm:$0xf]
      %v1047 = vld [vmem:[%s1 + $0x10] sm:$0x3]
      %v1053 = vunpack.c.l.b16 %v1043
      %v1054 = vunpack.c.l.b16 %v1044
      %v1055 = vunpack.c.l.b16 %v1045
      %v1056 = vunpack.c.l.b16 %v1046
      %v1057 = vunpack.c.l.b16 %v1047
      %v1058 = vpack.c.b16 %v1054, %v1053
      %v1059 = vpack.c.b16 %v1056, %v1055
      %v1060 = vpack.c.b16 %v1057, %v1057
      %vm1063 = vcmask 293888
      %v1064 = vsel %vm1063, %v1028, 0
      %v1066 = vsel %vm1063, %v1030, 0
      %v1068 = vsel %vm1063, %v1032, 0
      %v1070 = vsel %vm1063, %v1034, 0
      %v1072 = vsel %vm1063, %v1036, 0
      %v1074 = vsel %vm1063, %v1038, 0
      %v1076 = vsel %vm1063, %v1040, 0
      %v1078 = vsel %vm1063, %v1042, 0
      %vm1080 = vcmask 1041408
      %v1082 = vsel %vm1080, %v1060, 0
      %1084 = vmatprep.subr.bf16.mxu0 0
      %1085 = vmatpush1.bf16.msra.mxu0 %v1058
      %1086 = vmatprep.subr.bf16.mxu0 0
      %1087 = vmatpush1.bf16.msra.mxu0 %v1059
      %1088 = vmatprep.subr.bf16.mxu0 0
      %1089 = vmatpush1.bf16.msra.mxu0 %v1082
      %1090 = vmatprep.subr.bf16.mxu0 0
      %1091 = vmatpush1.bf16.msra.mxu0 0
      %1092 = vmatprep.subr.bf16.mxu0 0
      %1093 = vmatpush1.bf16.msra.mxu0 0
      %1094 = vmatprep.subr.bf16.mxu0 0
      %1095 = vmatpush1.bf16.msra.mxu0 0
      %1096 = vmatprep.subr.bf16.mxu0 0
      %1097 = vmatpush1.bf16.msra.mxu0 0
      %1098 = vmatprep.subr.bf16.mxu0 0
      %1099 = vmatpush1.bf16.msra.mxu0 0
      %1100 = vmatprep.subr.bf16.mxu0 0
      %1101 = vmatpush1.bf16.msra.mxu0 0
      %1102 = vmatprep.subr.bf16.mxu0 0
      %1103 = vmatpush1.bf16.msra.mxu0 0
      %1104 = vmatprep.subr.bf16.mxu0 0
      %1105 = vmatpush1.bf16.msra.mxu0 0
      %1106 = vmatprep.subr.bf16.mxu0 0
      %1107 = vmatpush1.bf16.msra.mxu0 0
      %1108 = vmatprep.subr.bf16.mxu0 0
      %1109 = vmatpush1.bf16.msra.mxu0 0
      %1110 = vmatprep.subr.bf16.mxu0 0
      %1111 = vmatpush1.bf16.msra.mxu0 0
      %1112 = vmatprep.subr.bf16.mxu0 0
      %1113 = vmatpush1.bf16.msra.mxu0 0
      %1114 = vmatprep.subr.bf16.mxu0 0
      %1115 = vmatpush1.bf16.msra.mxu0 0
      %1116 = vmatprep.mubr.bf16.mxu0 0
      %1117 = vmatmul.mubr.bf16.gmra.mrb[0].mxu0 %v1064
      %v1118 = vpop.f32.mrb[0].mxu0
      %v1119 = vadd.f32 0.0, %v1118
      %v1120 = vpop.f32.mrb[0].mxu0
      %v1121 = vpop.f32.mrb[0].mxu0
      %v1122 = vadd.f32 0.0, %v1121
      %v1123 = vpop.f32.mrb[0].mxu0
      %1124 = vmatprep.mubr.bf16.mxu0 0
      %1125 = vmatmul.mubr.bf16.gmra.mrb[0].mxu0 %v1066
      %v1126 = vpop.f32.mrb[0].mxu0
      %v1127 = vadd.f32 0.0, %v1126
      %v1128 = vpop.f32.mrb[0].mxu0
      %v1129 = vpop.f32.mrb[0].mxu0
      %v1130 = vadd.f32 0.0, %v1129
      %v1131 = vpop.f32.mrb[0].mxu0
      %1132 = vmatprep.mubr.bf16.mxu0 0
      %1133 = vmatmul.mubr.bf16.gmra.mrb[0].mxu0 %v1068
      %v1134 = vpop.f32.mrb[0].mxu0
      %v1135 = vadd.f32 0.0, %v1134
      %v1136 = vpop.f32.mrb[0].mxu0
      %v1137 = vpop.f32.mrb[0].mxu0
      %v1138 = vadd.f32 0.0, %v1137
      %v1139 = vpop.f32.mrb[0].mxu0
      %1140 = vmatprep.mubr.bf16.mxu0 0
      %1141 = vmatmul.mubr.bf16.gmra.mrb[0].mxu0 %v1070
      %v1142 = vpop.f32.mrb[0].mxu0
      %v1143 = vadd.f32 0.0, %v1142
      %v1144 = vpop.f32.mrb[0].mxu0
      %v1145 = vpop.f32.mrb[0].mxu0
      %v1146 = vadd.f32 0.0, %v1145
      %v1147 = vpop.f32.mrb[0].mxu0
      %1148 = vmatprep.mubr.bf16.mxu0 0
      %1149 = vmatmul.mubr.bf16.gmra.mrb[0].mxu0 %v1072
      %v1150 = vpop.f32.mrb[0].mxu0
      %v1151 = vadd.f32 0.0, %v1150
      %v1152 = vpop.f32.mrb[0].mxu0
      %v1153 = vpop.f32.mrb[0].mxu0
      %v1154 = vadd.f32 0.0, %v1153
      %v1155 = vpop.f32.mrb[0].mxu0
      %1156 = vmatprep.mubr.bf16.mxu0 0
      %1157 = vmatmul.mubr.bf16.gmra.mrb[0].mxu0 %v1074
      %v1158 = vpop.f32.mrb[0].mxu0
      %v1159 = vadd.f32 0.0, %v1158
      %v1160 = vpop.f32.mrb[0].mxu0
      %v1161 = vpop.f32.mrb[0].mxu0
      %v1162 = vadd.f32 0.0, %v1161
      %v1163 = vpop.f32.mrb[0].mxu0
      %1164 = vmatprep.mubr.bf16.mxu0 0
      %1165 = vmatmul.mubr.bf16.gmra.mrb[0].mxu0 %v1076
      %v1166 = vpop.f32.mrb[0].mxu0
      %v1167 = vadd.f32 0.0, %v1166
      %v1168 = vpop.f32.mrb[0].mxu0
      %v1169 = vpop.f32.mrb[0].mxu0
      %v1170 = vadd.f32 0.0, %v1169
      %v1171 = vpop.f32.mrb[0].mxu0
      %1172 = vmatprep.mubr.bf16.mxu0 0
      %1173 = vmatmul.mubr.bf16.gmra.mrb[0].mxu0 %v1078
      %v1174 = vpop.f32.mrb[0].mxu0
      %v1175 = vadd.f32 0.0, %v1174
      %v1176 = vpop.f32.mrb[0].mxu0
      %v1177 = vpop.f32.mrb[0].mxu0
      %v1178 = vadd.f32 0.0, %v1177
      %v1179 = vpop.f32.mrb[0].mxu0
      %1180 = vdwg.mxu0
      %v1181 = vld [vmem:[%s2] sm:$0x1]
      %v1183 = vlaneseq
      %v1184 = vshrl.u32 %v1183, 7
      %v1185 = vsub.s32 0, %v1184
      %v1186 = vrot.slane %v1181, %v1185
      %v1188 = vmul.f32 %v1119, %v1186
      %v1189 = vmul.f32 %v1122, %v1186
      %v1190 = vmul.f32 %v1127, %v1186
      %v1191 = vmul.f32 %v1130, %v1186
      %v1192 = vmul.f32 %v1135, %v1186
      %v1193 = vmul.f32 %v1138, %v1186
      %v1194 = vmul.f32 %v1143, %v1186
      %v1195 = vmul.f32 %v1146, %v1186
      %v1196 = vmul.f32 %v1151, %v1186
      %v1197 = vmul.f32 %v1154, %v1186
      %v1198 = vmul.f32 %v1159, %v1186
      %v1199 = vmul.f32 %v1162, %v1186
      %v1200 = vmul.f32 %v1167, %v1186
      %v1201 = vmul.f32 %v1170, %v1186
      %v1202 = vmul.f32 %v1175, %v1186
      %v1203 = vmul.f32 %v1178, %v1186
      %v1204 = vld [vmem:[%s3] sm:$0x1]
      %v1206 = vlaneseq
      %v1207 = vshrl.u32 %v1206, 7
      %v1208 = vsub.s32 0, %v1207
      %v1209 = vrot.slane %v1204, %v1208
      %v1211 = vadd.f32 %v1188, %v1209
      %v1212 = vadd.f32 %v1189, %v1209
      %v1213 = vadd.f32 %v1190, %v1209
      %v1214 = vadd.f32 %v1191, %v1209
      %v1215 = vadd.f32 %v1192, %v1209
      %v1216 = vadd.f32 %v1193, %v1209
      %v1217 = vadd.f32 %v1194, %v1209
      %v1218 = vadd.f32 %v1195, %v1209
      %v1219 = vadd.f32 %v1196, %v1209
      %v1220 = vadd.f32 %v1197, %v1209
      %v1221 = vadd.f32 %v1198, %v1209
      %v1222 = vadd.f32 %v1199, %v1209
      %v1223 = vadd.f32 %v1200, %v1209
      %v1224 = vadd.f32 %v1201, %v1209
      %v1225 = vadd.f32 %v1202, %v1209
      %v1226 = vadd.f32 %v1203, %v1209
      %1227 = vst.msk [vmem:[%s219] sm:$0xff] %vm924, %v1211
      %1228 = vst.msk [vmem:[%s219 + $0x8] sm:$0xff] %vm924, %v1212
      %1229 = vst.msk [vmem:[%s219 + $0x10] sm:$0xff] %vm924, %v1213
      %1230 = vst.msk [vmem:[%s219 + $0x18] sm:$0xff] %vm924, %v1214
      %1231 = vst.msk [vmem:[%s219 + $0x20] sm:$0xff] %vm924, %v1215
      %1232 = vst.msk [vmem:[%s219 + $0x28] sm:$0xff] %vm924, %v1216
      %1233 = vst.msk [vmem:[%s219 + $0x30] sm:$0xff] %vm924, %v1217
      %1234 = vst.msk [vmem:[%s219 + $0x38] sm:$0xff] %vm924, %v1218
      %1235 = vst.msk [vmem:[%s219 + $0x40] sm:$0xff] %vm924, %v1219
      %1236 = vst.msk [vmem:[%s219 + $0x48] sm:$0xff] %vm924, %v1220
      %1237 = vst.msk [vmem:[%s219 + $0x50] sm:$0xff] %vm924, %v1221
      %1238 = vst.msk [vmem:[%s219 + $0x58] sm:$0xff] %vm924, %v1222
      %1239 = vst.msk [vmem:[%s219 + $0x60] sm:$0xff] %vm924, %v1223
      %1240 = vst.msk [vmem:[%s219 + $0x68] sm:$0xff] %vm924, %v1224
      %1241 = vst.msk [vmem:[%s219 + $0x70] sm:$0xff] %vm924, %v1225
      %1242 = vst.msk [vmem:[%s219 + $0x78] sm:$0xff] %vm924, %v1226
      %s1243 = smul.u32 16, %s20
      %p1244 = scmp.lt.s32.totalorder %s19, 1
      %s1245 = scalar_select %p1244, %s19, 1
      %p1246 = scmp.lt.s32.totalorder %s1243, 31
      %s1247 = scalar_select %p1246, %s1243, 31
      %s1248 = smul.addr %s1245, 32
      %s1249 = sadd.s32 %s1247, %s1248
      %s1250 = smul.addr %s1249, 8
      %s1251 = scalar_lea.vmem %s4, %s1250
      // Predicated region
      $region37: #{_lambda_.1} parent=35 // pred_check
        %p1252 = pneg %p136
      $region38: #{_lambda_.1} parent=35 // pred_check_branch
        %1254 = sbr.rel (%p1252) target = $region40
      $region39: #{_lambda_.1} parent=35 // pred_region
        %s1255 = smul.u32 16, %s20
      $region40: #{_lambda_.1} parent=35 // pred_fallthru
        _
    $region36: #{_lambda_.1} parent=5 // pred_fallthru
      _
    %p1256 = scmp.le.s32.totalorder 2, %s10
    // Predicated region
    $region41: #{_lambda_.1} parent=5 // pred_check
      %p1257 = pneg %p1256
    $region42: #{_lambda_.1} parent=5 // pred_check_branch
      %1259 = sbr.rel (%p1257) target = $region44
    $region43: #{_lambda_.1} parent=5 // pred_region
      %s1260 = ssub.s32 %s10, 2
      // Predicated region
      $region45: #{_lambda_.1} parent=43 // pred_check
        %p1261 = pneg %p142
      $region46: #{_lambda_.1} parent=43 // pred_check_branch
        %1263 = sbr.rel (%p1261) target = $region48
      $region47: #{_lambda_.1} parent=43 // pred_region
        %s1264 = smul.u32 16, %s22
        %p1265 = scmp.lt.s32.totalorder %s21, 1
        %s1266 = scalar_select %p1265, %s21, 1
        %p1267 = scmp.lt.s32.totalorder %s1264, 31
        %s1268 = scalar_select %p1267, %s1264, 31
        %s1269 = smul.addr %s1266, 32
        %s1270 = sadd.s32 %s1268, %s1269
        %s1271 = smul.addr %s1270, 8
        %s1272 = scalar_lea.vmem %s4, %s1271
      $region48: #{_lambda_.1} parent=43 // pred_fallthru
        _
    $region44: #{_lambda_.1} parent=5 // pred_fallthru
      _
  $region6: #{_lambda_.1} parent=0 // loop_footer
    %s14 = sadd.s32 1, %s10
  $region7: #{_lambda_.1} parent=0 // loop_footer_branch
    %9 = sbr.rel target = $region3
  $region8: #{_lambda_.1} parent=0 // loop_exit
    _

</llo_original>
